<compile_context>
chip_gen: v5e
topology: v5e:2x2
jax: 0.10.0
libtpu: 0.0.40
codegen_flags: <defaults>
</compile_context>

<pallas_src>
import functools
import math

import jax
import jax.numpy as jnp
from jax.experimental import pallas as pl
from jax.experimental.pallas import tpu as pltpu

EPS = 1e-5


def _silu(z):
    # z * sigmoid(z); sigmoid via tanh keeps the work on the EUP slot
    # (no VALU divide) and is numerically exact.
    return z * (0.5 * (jnp.tanh(0.5 * z) + 1.0))


def resnet_block_kernel(x_ref, m1_ref, b1_ref, g1_ref, be1_ref,
                        m2_ref, b2_ref, g2_ref, be2_ref,
                        temb_ref, wt_ref, bt_ref, csum_ref,
                        o_ref, *, img_h, inv_n):
    # x_ref:    (R, WC)      lane-packed NHWC activation, R = B*H, WC = W*Cpad
    # m*_ref:   (3, WC, WC)  banded conv weights (one band per vertical tap ky)
    # b*/g*/be*/bt_ref: (1, WC) channel params tiled along W
    # temb_ref: (R, TDIM)    time embedding pre-broadcast to packed rows
    # wt_ref:   (TDIM, WC)   time-MLP weights tiled along W
    # csum_ref: (WC, WC)     channel-sum / channel-broadcast matrix
    R, WC = x_ref.shape
    x = x_ref[...]
    csum = csum_ref[...]

    # Per-row "height inside the image"; masks for the vertical halo taps.
    row = jax.lax.broadcasted_iota(jnp.int32, (R, WC), 0)
    if img_h & (img_h - 1) == 0:              # static Python branch
        hidx = row & (img_h - 1)
    else:
        hidx = jax.lax.rem(row, img_h)
    not_top = hidx != 0
    not_bot = hidx != (img_h - 1)

    def shifted_taps(a):
        # up[r] = a[r-1] (zero on the first image row), dn[r] = a[r+1]
        # (zero on the last): XLU sublane roll + VPU select, no scratch,
        # no sublane-misaligned VMEM copies.
        up = jnp.where(not_top, pltpu.roll(a, shift=1, axis=0), 0.0)
        dn = jnp.where(not_bot, pltpu.roll(a, shift=R - 1, axis=0), 0.0)
        return up, dn

    def conv3x3(a, m_ref, b_ref):
        # One banded (R, WC) @ (WC, WC) matmul per vertical tap; horizontal
        # zero padding is folded into the banded weights.
        up, dn = shifted_taps(a)
        h = jnp.dot(a, m_ref[1], preferred_element_type=jnp.float32)
        h = h + jnp.dot(up, m_ref[0], preferred_element_type=jnp.float32)
        h = h + jnp.dot(dn, m_ref[2], preferred_element_type=jnp.float32)
        return h + b_ref[...]

    def batchnorm(h, g, be):
        # Training-mode BN (biased batch stats over B*H*W).  Per-channel sums
        # are reduced over the W groups / broadcast back with one tiny
        # channel-sum matmul each (no (N, C) relayout).  Kept as two (1, WC)
        # dots: fusing them needs an unaligned sublane concat for zero gain
        # at WC=128.
        s1 = jnp.sum(h, axis=0, keepdims=True)            # (1, WC)
        s2 = jnp.sum(h * h, axis=0, keepdims=True)        # (1, WC)
        mean = jnp.dot(s1, csum, preferred_element_type=jnp.float32) * inv_n
        ex2 = jnp.dot(s2, csum, preferred_element_type=jnp.float32) * inv_n
        var = ex2 - mean * mean
        scale = g * jax.lax.rsqrt(var + EPS)
        shift = be - mean * scale
        return h * scale + shift

    # conv1 -> bn1 -> SiLU
    h = _silu(batchnorm(conv3x3(x, m1_ref, b1_ref), g1_ref[...], be1_ref[...]))

    # + time embedding (Linear(time_dim -> C), W-tiled weights, rows pre-broadcast)
    te = jnp.dot(temb_ref[...], wt_ref[...],
                 preferred_element_type=jnp.float32) + bt_ref[...]
    h = h + te

    # conv2 -> bn2 -> +residual -> SiLU
    h = batchnorm(conv3x3(h, m2_ref, b2_ref), g2_ref[...], be2_ref[...])
    h = _silu(h + x)

    o_ref[...] = h.astype(o_ref.dtype)


def _band_conv_weights(w_hwio, W):
    """HWIO (3,3,C,C) 3x3 weights -> banded matrices (3, W*C, W*C).

    m[ky, wi*C+ci, wo*C+co] = w[ky, wi-wo+1, ci, co] if |wi-wo| <= 1 else 0,
    so `packed_row @ m[ky]` performs the kx / C_in contraction for vertical
    tap ky with implicit horizontal zero padding.
    """
    wi = jnp.arange(W)[:, None]
    wo = jnp.arange(W)[None, :]
    kx = wi - wo + 1                                      # (W, W)
    valid = ((kx >= 0) & (kx <= 2)).astype(w_hwio.dtype)
    taps = w_hwio[:, jnp.clip(kx, 0, 2)]                  # (3, W, W, C, C)
    taps = taps * valid[None, :, :, None, None]
    m = jnp.transpose(taps, (0, 1, 3, 2, 4))              # (3, W, C, W, C)
    C = w_hwio.shape[2]
    return m.reshape(3, W * C, W * C)


def prepare_resnet_params(params, W, lane=128):
    """One-time parameter preprocessing (hoisted out of the per-call path).

    Pads channels so W*Cpad is a multiple of `lane` (lane-dense layout) and
    builds the banded conv weights, W-tiled channel params and the
    channel-sum matrix.  Padded channels carry zero weights / bias / gamma /
    beta, so padded lanes stay exactly zero through the whole block.
    """
    C = params["w1_hwio"].shape[-1]
    q = lane // math.gcd(W, lane)
    CP = max(((C + q - 1) // q) * q, C)
    pc = CP - C

    def pad_w(w):                                   # (3,3,C,C) -> (3,3,CP,CP)
        return jnp.pad(w.astype(jnp.float32), ((0, 0), (0, 0), (0, pc), (0, pc)))

    def tile_vec(v):                                # (r,C) -> (r, W*CP)
        return jnp.tile(jnp.pad(v.astype(jnp.float32), ((0, 0), (0, pc))), (1, W))

    return dict(
        m1=_band_conv_weights(pad_w(params["w1_hwio"]), W),
        m2=_band_conv_weights(pad_w(params["w2_hwio"]), W),
        b1=tile_vec(params["b1"]), g1=tile_vec(params["g1"]), be1=tile_vec(params["be1"]),
        b2=tile_vec(params["b2"]), g2=tile_vec(params["g2"]), be2=tile_vec(params["be2"]),
        wt=tile_vec(params["wt"]), bt=tile_vec(params["bt"]),
        csum=jnp.tile(jnp.eye(CP, dtype=jnp.float32), (W, W)),
    )


def resnet_block_pallas_nhwc(x_nhwc, t_emb, prep):
    # NHWC-native entry point: no transposes at all.
    B, H, W, C = x_nhwc.shape
    WC = prep["m1"].shape[-1]
    CP = WC // W
    R = B * H

    x_p = jnp.pad(x_nhwc.astype(jnp.float32),
                  ((0, 0), (0, 0), (0, 0), (0, CP - C))).reshape(R, WC)
    temb_rows = jnp.repeat(t_emb.astype(jnp.float32), H, axis=0)   # (R, TDIM)

    kernel = functools.partial(resnet_block_kernel,
                               img_h=H, inv_n=1.0 / float(B * H * W))
    vmem = pl.BlockSpec(memory_space=pltpu.MemorySpace.VMEM)
    inputs = (x_p, prep["m1"], prep["b1"], prep["g1"], prep["be1"],
              prep["m2"], prep["b2"], prep["g2"], prep["be2"],
              temb_rows, prep["wt"], prep["bt"], prep["csum"])
    out = pl.pallas_call(
        kernel,
        out_shape=jax.ShapeDtypeStruct((R, WC), jnp.float32),
        in_specs=[vmem] * len(inputs),
        out_specs=vmem,
    )(*inputs)
    return out.reshape(B, H, W, CP)[..., :C]


@jax.jit
def resnet_block_pallas(x_nchw, t_emb, prep):
    # NCHW adapter for the PyTorch interface: one boundary relayout per
    # direction, fused into this jit.  NHWC graphs should call
    # resnet_block_pallas_nhwc directly and skip both transposes.
    x = jnp.transpose(x_nchw, (0, 2, 3, 1))
    y = resnet_block_pallas_nhwc(x, t_emb, prep)
    return jnp.transpose(y, (0, 3, 1, 2))


def resnet_block_ref(x_nchw, params, t_emb):
    # Pure-JAX reference with identical semantics (training-mode BN).
    x = jnp.transpose(x_nchw, (0, 2, 3, 1))

    def conv(h, w_hwio, b):
        y = jax.lax.conv_general_dilated(
            h, w_hwio, window_strides=(1, 1), padding="SAME",
            dimension_numbers=("NHWC", "HWIO", "NHWC"))
        return y + b.reshape(1, 1, 1, -1)

    def bn(h, g, be):
        m = jnp.mean(h, axis=(0, 1, 2))
        v = jnp.mean((h - m) ** 2, axis=(0, 1, 2))
        return (h - m) / jnp.sqrt(v + EPS) * g.reshape(-1) + be.reshape(-1)

    silu = lambda z: z * jax.nn.sigmoid(z)

    h = silu(bn(conv(x, params["w1_hwio"], params["b1"]),
                params["g1"], params["be1"]))
    te = t_emb @ params["wt"] + params["bt"]
    h = h + te[:, None, None, :]
    h = bn(conv(h, params["w2_hwio"], params["b2"]),
           params["g2"], params["be2"]) + x
    h = silu(h)
    return jnp.transpose(h, (0, 3, 1, 2))


if __name__ == "__main__":
    B, C, H, W, TDIM = 2, 4, 16, 16, 8
    key = jax.random.PRNGKey(0)
    ks = jax.random.split(key, 12)

    x = jax.random.normal(ks[0], (B, C, H, W), jnp.float32)
    t_emb = jax.random.normal(ks[1], (B, TDIM), jnp.float32)

    params = dict(
        w1_hwio=0.2 * jax.random.normal(ks[2], (3, 3, C, C), jnp.float32),
        b1=0.1 * jax.random.normal(ks[3], (1, C), jnp.float32),
        g1=1.0 + 0.1 * jax.random.normal(ks[4], (1, C), jnp.float32),
        be1=0.1 * jax.random.normal(ks[5], (1, C), jnp.float32),
        w2_hwio=0.2 * jax.random.normal(ks[6], (3, 3, C, C), jnp.float32),
        b2=0.1 * jax.random.normal(ks[7], (1, C), jnp.float32),
        g2=1.0 + 0.1 * jax.random.normal(ks[8], (1, C), jnp.float32),
        be2=0.1 * jax.random.normal(ks[9], (1, C), jnp.float32),
        wt=0.2 * jax.random.normal(ks[10], (TDIM, C), jnp.float32),
        bt=0.1 * jax.random.normal(ks[11], (1, C), jnp.float32),
    )

    # One-time parameter preprocessing (hoisted out of the per-call path).
    prep = jax.tree_util.tree_map(jax.block_until_ready,
                                  prepare_resnet_params(params, W=W))

    out = jax.block_until_ready(resnet_block_pallas(x, t_emb, prep))
    ref = jax.block_until_ready(resnet_block_ref(x, params, t_emb))

    assert out.shape == (B, C, H, W)
    err = float(jnp.max(jnp.abs(out - ref)))
    if err > 1e-3:
        raise AssertionError(f"mismatch vs reference: max abs err = {err}")
    print("KERNEL_OK")
</pallas_src>

<mosaic_0001>
module attributes {stable_mosaic.version = 11 : i64} {
  func.func @resnet_block_kernel(%arg0: memref<32x128xf32, #tpu.memory_space<vmem>>, %arg1: memref<3x128x128xf32, #tpu.memory_space<vmem>>, %arg2: memref<1x128xf32, #tpu.memory_space<vmem>>, %arg3: memref<1x128xf32, #tpu.memory_space<vmem>>, %arg4: memref<1x128xf32, #tpu.memory_space<vmem>>, %arg5: memref<3x128x128xf32, #tpu.memory_space<vmem>>, %arg6: memref<1x128xf32, #tpu.memory_space<vmem>>, %arg7: memref<1x128xf32, #tpu.memory_space<vmem>>, %arg8: memref<1x128xf32, #tpu.memory_space<vmem>>, %arg9: memref<32x8xf32, #tpu.memory_space<vmem>>, %arg10: memref<8x128xf32, #tpu.memory_space<vmem>>, %arg11: memref<1x128xf32, #tpu.memory_space<vmem>>, %arg12: memref<128x128xf32, #tpu.memory_space<vmem>>, %arg13: memref<32x128xf32, #tpu.memory_space<vmem>>) attributes {dimension_semantics = [], scalar_prefetch = 0 : i64, scratch_operands = 0 : i64, tpu.core_type = #tpu.core_type<tc>} {
    %c0 = arith.constant 0 : index
    %c0_0 = arith.constant 0 : index
    %0 = vector.load %arg0[%c0, %c0_0] : memref<32x128xf32, #tpu.memory_space<vmem>>, vector<32x128xf32>
    %c0_1 = arith.constant 0 : index
    %c0_2 = arith.constant 0 : index
    %1 = vector.load %arg12[%c0_1, %c0_2] : memref<128x128xf32, #tpu.memory_space<vmem>>, vector<128x128xf32>
    %2 = tpu.iota {dimensions = array<i32: 0>} : vector<32x128xi32>
    %c15_i32 = arith.constant 15 : i32
    %3 = vector.broadcast %c15_i32 : i32 to vector<32x128xi32>
    %4 = arith.andi %2, %3 : vector<32x128xi32>
    %c0_i32 = arith.constant 0 : i32
    %5 = vector.broadcast %c0_i32 : i32 to vector<32x128xi32>
    %6 = arith.cmpi ne, %4, %5 : vector<32x128xi32>
    %c15_i32_3 = arith.constant 15 : i32
    %7 = vector.broadcast %c15_i32_3 : i32 to vector<32x128xi32>
    %8 = arith.cmpi ne, %4, %7 : vector<32x128xi32>
    %c1_i32 = arith.constant 1 : i32
    %9 = tpu.dynamic_rotate %0 by %c1_i32 dim 0 : vector<32x128xf32>, i32 -> vector<32x128xf32>
    %cst = arith.constant 0.000000e+00 : f32
    %10 = vector.broadcast %cst : f32 to vector<32x128xf32>
    %11 = arith.select %6, %9, %10 : vector<32x128xi1>, vector<32x128xf32>
    %c31_i32 = arith.constant 31 : i32
    %12 = tpu.dynamic_rotate %0 by %c31_i32 dim 0 : vector<32x128xf32>, i32 -> vector<32x128xf32>
    %cst_4 = arith.constant 0.000000e+00 : f32
    %13 = vector.broadcast %cst_4 : f32 to vector<32x128xf32>
    %14 = arith.select %8, %12, %13 : vector<32x128xi1>, vector<32x128xf32>
    %c1 = arith.constant 1 : index
    %c0_5 = arith.constant 0 : index
    %c0_6 = arith.constant 0 : index
    %15 = vector.load %arg1[%c1, %c0_5, %c0_6] : memref<3x128x128xf32, #tpu.memory_space<vmem>>, vector<1x128x128xf32>
    %16 = vector.shape_cast %15 : vector<1x128x128xf32> to vector<128x128xf32>
    %cst_7 = arith.constant dense<0.000000e+00> : vector<32x128xf32>
    %17 = tpu.matmul %0, %16, %cst_7 {dimension_numbers = #tpu.dot_dimension_numbers<[1], [0], [0], [1], [0, 0, 1, 1], [], []>} : vector<32x128xf32>, vector<128x128xf32>, vector<32x128xf32> -> vector<32x128xf32>
    %c0_8 = arith.constant 0 : index
    %c0_9 = arith.constant 0 : index
    %c0_10 = arith.constant 0 : index
    %18 = vector.load %arg1[%c0_8, %c0_9, %c0_10] : memref<3x128x128xf32, #tpu.memory_space<vmem>>, vector<1x128x128xf32>
    %19 = vector.shape_cast %18 : vector<1x128x128xf32> to vector<128x128xf32>
    %cst_11 = arith.constant dense<0.000000e+00> : vector<32x128xf32>
    %20 = tpu.matmul %11, %19, %cst_11 {dimension_numbers = #tpu.dot_dimension_numbers<[1], [0], [0], [1], [0, 0, 1, 1], [], []>} : vector<32x128xf32>, vector<128x128xf32>, vector<32x128xf32> -> vector<32x128xf32>
    %21 = arith.addf %17, %20 : vector<32x128xf32>
    %c2 = arith.constant 2 : index
    %c0_12 = arith.constant 0 : index
    %c0_13 = arith.constant 0 : index
    %22 = vector.load %arg1[%c2, %c0_12, %c0_13] : memref<3x128x128xf32, #tpu.memory_space<vmem>>, vector<1x128x128xf32>
    %23 = vector.shape_cast %22 : vector<1x128x128xf32> to vector<128x128xf32>
    %cst_14 = arith.constant dense<0.000000e+00> : vector<32x128xf32>
    %24 = tpu.matmul %14, %23, %cst_14 {dimension_numbers = #tpu.dot_dimension_numbers<[1], [0], [0], [1], [0, 0, 1, 1], [], []>} : vector<32x128xf32>, vector<128x128xf32>, vector<32x128xf32> -> vector<32x128xf32>
    %25 = arith.addf %21, %24 : vector<32x128xf32>
    %c0_15 = arith.constant 0 : index
    %c0_16 = arith.constant 0 : index
    %26 = vector.load %arg2[%c0_15, %c0_16] : memref<1x128xf32, #tpu.memory_space<vmem>>, vector<1x128xf32>
    %27 = vector.broadcast %26 : vector<1x128xf32> to vector<32x128xf32>
    %28 = arith.addf %25, %27 : vector<32x128xf32>
    %c0_17 = arith.constant 0 : index
    %c0_18 = arith.constant 0 : index
    %29 = vector.load %arg3[%c0_17, %c0_18] : memref<1x128xf32, #tpu.memory_space<vmem>>, vector<1x128xf32>
    %c0_19 = arith.constant 0 : index
    %c0_20 = arith.constant 0 : index
    %30 = vector.load %arg4[%c0_19, %c0_20] : memref<1x128xf32, #tpu.memory_space<vmem>>, vector<1x128xf32>
    %cst_21 = arith.constant dense<0.000000e+00> : vector<128xf32>
    %31 = vector.multi_reduction <add>, %28, %cst_21 [0] : vector<32x128xf32> to vector<128xf32>
    %32 = vector.shape_cast %31 : vector<128xf32> to vector<1x128xf32>
    %33 = arith.mulf %28, %28 : vector<32x128xf32>
    %cst_22 = arith.constant dense<0.000000e+00> : vector<128xf32>
    %34 = vector.multi_reduction <add>, %33, %cst_22 [0] : vector<32x128xf32> to vector<128xf32>
    %35 = vector.shape_cast %34 : vector<128xf32> to vector<1x128xf32>
    %cst_23 = arith.constant dense<0.000000e+00> : vector<1x128xf32>
    %36 = tpu.matmul %32, %1, %cst_23 {dimension_numbers = #tpu.dot_dimension_numbers<[1], [0], [0], [1], [0, 0, 1, 1], [], []>} : vector<1x128xf32>, vector<128x128xf32>, vector<1x128xf32> -> vector<1x128xf32>
    %cst_24 = arith.constant 0.001953125 : f32
    %37 = vector.broadcast %cst_24 : f32 to vector<1x128xf32>
    %38 = arith.mulf %36, %37 : vector<1x128xf32>
    %cst_25 = arith.constant dense<0.000000e+00> : vector<1x128xf32>
    %39 = tpu.matmul %35, %1, %cst_25 {dimension_numbers = #tpu.dot_dimension_numbers<[1], [0], [0], [1], [0, 0, 1, 1], [], []>} : vector<1x128xf32>, vector<128x128xf32>, vector<1x128xf32> -> vector<1x128xf32>
    %cst_26 = arith.constant 0.001953125 : f32
    %40 = vector.broadcast %cst_26 : f32 to vector<1x128xf32>
    %41 = arith.mulf %39, %40 : vector<1x128xf32>
    %42 = arith.mulf %38, %38 : vector<1x128xf32>
    %43 = arith.subf %41, %42 : vector<1x128xf32>
    %cst_27 = arith.constant 9.99999974E-6 : f32
    %44 = vector.broadcast %cst_27 : f32 to vector<1x128xf32>
    %45 = arith.addf %43, %44 : vector<1x128xf32>
    %46 = math.rsqrt %45 : vector<1x128xf32>
    %47 = arith.mulf %29, %46 : vector<1x128xf32>
    %48 = arith.mulf %38, %47 : vector<1x128xf32>
    %49 = arith.subf %30, %48 : vector<1x128xf32>
    %50 = vector.broadcast %47 : vector<1x128xf32> to vector<32x128xf32>
    %51 = arith.mulf %28, %50 : vector<32x128xf32>
    %52 = vector.broadcast %49 : vector<1x128xf32> to vector<32x128xf32>
    %53 = arith.addf %51, %52 : vector<32x128xf32>
    %cst_28 = arith.constant 5.000000e-01 : f32
    %54 = vector.broadcast %cst_28 : f32 to vector<32x128xf32>
    %55 = arith.mulf %54, %53 : vector<32x128xf32>
    %56 = math.tanh %55 : vector<32x128xf32>
    %cst_29 = arith.constant 1.000000e+00 : f32
    %57 = vector.broadcast %cst_29 : f32 to vector<32x128xf32>
    %58 = arith.addf %56, %57 : vector<32x128xf32>
    %cst_30 = arith.constant 5.000000e-01 : f32
    %59 = vector.broadcast %cst_30 : f32 to vector<32x128xf32>
    %60 = arith.mulf %59, %58 : vector<32x128xf32>
    %61 = arith.mulf %53, %60 : vector<32x128xf32>
    %c0_31 = arith.constant 0 : index
    %c0_32 = arith.constant 0 : index
    %62 = vector.load %arg9[%c0_31, %c0_32] : memref<32x8xf32, #tpu.memory_space<vmem>>, vector<32x8xf32>
    %c0_33 = arith.constant 0 : index
    %c0_34 = arith.constant 0 : index
    %63 = vector.load %arg10[%c0_33, %c0_34] : memref<8x128xf32, #tpu.memory_space<vmem>>, vector<8x128xf32>
    %cst_35 = arith.constant dense<0.000000e+00> : vector<32x128xf32>
    %64 = tpu.matmul %62, %63, %cst_35 {dimension_numbers = #tpu.dot_dimension_numbers<[1], [0], [0], [1], [0, 0, 1, 1], [], []>} : vector<32x8xf32>, vector<8x128xf32>, vector<32x128xf32> -> vector<32x128xf32>
    %c0_36 = arith.constant 0 : index
    %c0_37 = arith.constant 0 : index
    %65 = vector.load %arg11[%c0_36, %c0_37] : memref<1x128xf32, #tpu.memory_space<vmem>>, vector<1x128xf32>
    %66 = vector.broadcast %65 : vector<1x128xf32> to vector<32x128xf32>
    %67 = arith.addf %64, %66 : vector<32x128xf32>
    %68 = arith.addf %61, %67 : vector<32x128xf32>
    %c1_i32_38 = arith.constant 1 : i32
    %69 = tpu.dynamic_rotate %68 by %c1_i32_38 dim 0 : vector<32x128xf32>, i32 -> vector<32x128xf32>
    %cst_39 = arith.constant 0.000000e+00 : f32
    %70 = vector.broadcast %cst_39 : f32 to vector<32x128xf32>
    %71 = arith.select %6, %69, %70 : vector<32x128xi1>, vector<32x128xf32>
    %c31_i32_40 = arith.constant 31 : i32
    %72 = tpu.dynamic_rotate %68 by %c31_i32_40 dim 0 : vector<32x128xf32>, i32 -> vector<32x128xf32>
    %cst_41 = arith.constant 0.000000e+00 : f32
    %73 = vector.broadcast %cst_41 : f32 to vector<32x128xf32>
    %74 = arith.select %8, %72, %73 : vector<32x128xi1>, vector<32x128xf32>
    %c1_42 = arith.constant 1 : index
    %c0_43 = arith.constant 0 : index
    %c0_44 = arith.constant 0 : index
    %75 = vector.load %arg5[%c1_42, %c0_43, %c0_44] : memref<3x128x128xf32, #tpu.memory_space<vmem>>, vector<1x128x128xf32>
    %76 = vector.shape_cast %75 : vector<1x128x128xf32> to vector<128x128xf32>
    %cst_45 = arith.constant dense<0.000000e+00> : vector<32x128xf32>
    %77 = tpu.matmul %68, %76, %cst_45 {dimension_numbers = #tpu.dot_dimension_numbers<[1], [0], [0], [1], [0, 0, 1, 1], [], []>} : vector<32x128xf32>, vector<128x128xf32>, vector<32x128xf32> -> vector<32x128xf32>
    %c0_46 = arith.constant 0 : index
    %c0_47 = arith.constant 0 : index
    %c0_48 = arith.constant 0 : index
    %78 = vector.load %arg5[%c0_46, %c0_47, %c0_48] : memref<3x128x128xf32, #tpu.memory_space<vmem>>, vector<1x128x128xf32>
    %79 = vector.shape_cast %78 : vector<1x128x128xf32> to vector<128x128xf32>
    %cst_49 = arith.constant dense<0.000000e+00> : vector<32x128xf32>
    %80 = tpu.matmul %71, %79, %cst_49 {dimension_numbers = #tpu.dot_dimension_numbers<[1], [0], [0], [1], [0, 0, 1, 1], [], []>} : vector<32x128xf32>, vector<128x128xf32>, vector<32x128xf32> -> vector<32x128xf32>
    %81 = arith.addf %77, %80 : vector<32x128xf32>
    %c2_50 = arith.constant 2 : index
    %c0_51 = arith.constant 0 : index
    %c0_52 = arith.constant 0 : index
    %82 = vector.load %arg5[%c2_50, %c0_51, %c0_52] : memref<3x128x128xf32, #tpu.memory_space<vmem>>, vector<1x128x128xf32>
    %83 = vector.shape_cast %82 : vector<1x128x128xf32> to vector<128x128xf32>
    %cst_53 = arith.constant dense<0.000000e+00> : vector<32x128xf32>
    %84 = tpu.matmul %74, %83, %cst_53 {dimension_numbers = #tpu.dot_dimension_numbers<[1], [0], [0], [1], [0, 0, 1, 1], [], []>} : vector<32x128xf32>, vector<128x128xf32>, vector<32x128xf32> -> vector<32x128xf32>
    %85 = arith.addf %81, %84 : vector<32x128xf32>
    %c0_54 = arith.constant 0 : index
    %c0_55 = arith.constant 0 : index
    %86 = vector.load %arg6[%c0_54, %c0_55] : memref<1x128xf32, #tpu.memory_space<vmem>>, vector<1x128xf32>
    %87 = vector.broadcast %86 : vector<1x128xf32> to vector<32x128xf32>
    %88 = arith.addf %85, %87 : vector<32x128xf32>
    %c0_56 = arith.constant 0 : index
    %c0_57 = arith.constant 0 : index
    %89 = vector.load %arg7[%c0_56, %c0_57] : memref<1x128xf32, #tpu.memory_space<vmem>>, vector<1x128xf32>
    %c0_58 = arith.constant 0 : index
    %c0_59 = arith.constant 0 : index
    %90 = vector.load %arg8[%c0_58, %c0_59] : memref<1x128xf32, #tpu.memory_space<vmem>>, vector<1x128xf32>
    %cst_60 = arith.constant dense<0.000000e+00> : vector<128xf32>
    %91 = vector.multi_reduction <add>, %88, %cst_60 [0] : vector<32x128xf32> to vector<128xf32>
    %92 = vector.shape_cast %91 : vector<128xf32> to vector<1x128xf32>
    %93 = arith.mulf %88, %88 : vector<32x128xf32>
    %cst_61 = arith.constant dense<0.000000e+00> : vector<128xf32>
    %94 = vector.multi_reduction <add>, %93, %cst_61 [0] : vector<32x128xf32> to vector<128xf32>
    %95 = vector.shape_cast %94 : vector<128xf32> to vector<1x128xf32>
    %cst_62 = arith.constant dense<0.000000e+00> : vector<1x128xf32>
    %96 = tpu.matmul %92, %1, %cst_62 {dimension_numbers = #tpu.dot_dimension_numbers<[1], [0], [0], [1], [0, 0, 1, 1], [], []>} : vector<1x128xf32>, vector<128x128xf32>, vector<1x128xf32> -> vector<1x128xf32>
    %cst_63 = arith.constant 0.001953125 : f32
    %97 = vector.broadcast %cst_63 : f32 to vector<1x128xf32>
    %98 = arith.mulf %96, %97 : vector<1x128xf32>
    %cst_64 = arith.constant dense<0.000000e+00> : vector<1x128xf32>
    %99 = tpu.matmul %95, %1, %cst_64 {dimension_numbers = #tpu.dot_dimension_numbers<[1], [0], [0], [1], [0, 0, 1, 1], [], []>} : vector<1x128xf32>, vector<128x128xf32>, vector<1x128xf32> -> vector<1x128xf32>
    %cst_65 = arith.constant 0.001953125 : f32
    %100 = vector.broadcast %cst_65 : f32 to vector<1x128xf32>
    %101 = arith.mulf %99, %100 : vector<1x128xf32>
    %102 = arith.mulf %98, %98 : vector<1x128xf32>
    %103 = arith.subf %101, %102 : vector<1x128xf32>
    %cst_66 = arith.constant 9.99999974E-6 : f32
    %104 = vector.broadcast %cst_66 : f32 to vector<1x128xf32>
    %105 = arith.addf %103, %104 : vector<1x128xf32>
    %106 = math.rsqrt %105 : vector<1x128xf32>
    %107 = arith.mulf %89, %106 : vector<1x128xf32>
    %108 = arith.mulf %98, %107 : vector<1x128xf32>
    %109 = arith.subf %90, %108 : vector<1x128xf32>
    %110 = vector.broadcast %107 : vector<1x128xf32> to vector<32x128xf32>
    %111 = arith.mulf %88, %110 : vector<32x128xf32>
    %112 = vector.broadcast %109 : vector<1x128xf32> to vector<32x128xf32>
    %113 = arith.addf %111, %112 : vector<32x128xf32>
    %114 = arith.addf %113, %0 : vector<32x128xf32>
    %cst_67 = arith.constant 5.000000e-01 : f32
    %115 = vector.broadcast %cst_67 : f32 to vector<32x128xf32>
    %116 = arith.mulf %115, %114 : vector<32x128xf32>
    %117 = math.tanh %116 : vector<32x128xf32>
    %cst_68 = arith.constant 1.000000e+00 : f32
    %118 = vector.broadcast %cst_68 : f32 to vector<32x128xf32>
    %119 = arith.addf %117, %118 : vector<32x128xf32>
    %cst_69 = arith.constant 5.000000e-01 : f32
    %120 = vector.broadcast %cst_69 : f32 to vector<32x128xf32>
    %121 = arith.mulf %120, %119 : vector<32x128xf32>
    %122 = arith.mulf %114, %121 : vector<32x128xf32>
    %c0_70 = arith.constant 0 : index
    %c0_71 = arith.constant 0 : index
    %123 = vector.load %arg13[%c0_70, %c0_71] : memref<32x128xf32, #tpu.memory_space<vmem>>, vector<32x128xf32>
    tpu.vector_store %arg13[%c0_70, %c0_71], %122 {strides = array<i32>} : memref<32x128xf32, #tpu.memory_space<vmem>>, vector<32x128xf32>,
    return
  }
}

</mosaic_0001>

<llo_original>
// kernel: resnet_block_pallas.1
$region0: #{resnet_block_pallas.1}
  #allocation0 [shape = 'u32[]', space=smem, size = 0x4, offset = 0x4, fixed_abs, tag = 'smem constant byte address 0x4 - core index']
  #allocation1 [shape = 'u32[72,128]{1,0:T(1,128)}', space=vmem, size = 0x9000, scoped, tag = 'internal scratch']
  %s0 = inlined_call_operand.vmem [shape: f32[32,128], index: 0, kind: input, shape index: {}]
  %s1 = inlined_call_operand.vmem [shape: f32[3,128,128], index: 1, kind: input, shape index: {}]
  %s2 = inlined_call_operand.vmem [shape: f32[1,128], index: 2, kind: input, shape index: {}]
  %s3 = inlined_call_operand.vmem [shape: f32[1,128], index: 3, kind: input, shape index: {}]
  %s4 = inlined_call_operand.vmem [shape: f32[1,128], index: 4, kind: input, shape index: {}]
  %s5 = inlined_call_operand.vmem [shape: f32[3,128,128], index: 5, kind: input, shape index: {}]
  %s6 = inlined_call_operand.vmem [shape: f32[1,128], index: 6, kind: input, shape index: {}]
  %s7 = inlined_call_operand.vmem [shape: f32[1,128], index: 7, kind: input, shape index: {}]
  %s8 = inlined_call_operand.vmem [shape: f32[1,128], index: 8, kind: input, shape index: {}]
  %s9 = inlined_call_operand.vmem [shape: f32[32,8], index: 9, kind: input, shape index: {}]
  %s10 = inlined_call_operand.vmem [shape: f32[8,128], index: 10, kind: input, shape index: {}]
  %s11 = inlined_call_operand.vmem [shape: f32[1,128], index: 11, kind: input, shape index: {}]
  %s12 = inlined_call_operand.vmem [shape: f32[128,128], index: 12, kind: input, shape index: {}]
  %s13 = inlined_call_operand.vmem [shape: f32[32,128], index: 13, kind: output, shape index: {}]
  %s14 = sld [smem:[#allocation0]]
  $region62: #{resnet_block_pallas.1} parent=0
    _
  %s16 = ssub.s32 1, %s14
  %s17 = scalar_select 0, %s16, %s14
  // Predicated region
  $region2: #{resnet_block_pallas.1} parent=0 // pred_check
    _
  $region3: #{resnet_block_pallas.1} parent=0 // pred_check_branch
    %19 = sbr.rel (0) target = $region5
  $region4: #{resnet_block_pallas.1} parent=0 // pred_region
    _
  $region5: #{resnet_block_pallas.1} parent=0 // pred_fallthru
    _
  // Predicated region
  $region6: #{resnet_block_pallas.1} parent=0 // pred_check
    _
  $region7: #{resnet_block_pallas.1} parent=0 // pred_check_branch
    %21 = sbr.rel (0) target = $region9
  $region8: #{resnet_block_pallas.1} parent=0 // pred_region
    _
  $region9: #{resnet_block_pallas.1} parent=0 // pred_fallthru
    _
  // Predicated region
  $region10: #{resnet_block_pallas.1} parent=0 // pred_check
    _
  $region11: #{resnet_block_pallas.1} parent=0 // pred_check_branch
    %23 = sbr.rel (0) target = $region13
  $region12: #{resnet_block_pallas.1} parent=0 // pred_region
    _
  $region13: #{resnet_block_pallas.1} parent=0 // pred_fallthru
    _
  // Predicated region
  $region14: #{resnet_block_pallas.1} parent=0 // pred_check
    _
  $region15: #{resnet_block_pallas.1} parent=0 // pred_check_branch
    %25 = sbr.rel (0) target = $region17
  $region16: #{resnet_block_pallas.1} parent=0 // pred_region
    _
  $region17: #{resnet_block_pallas.1} parent=0 // pred_fallthru
    _
  // Predicated region
  $region18: #{resnet_block_pallas.1} parent=0 // pred_check
    _
  $region19: #{resnet_block_pallas.1} parent=0 // pred_check_branch
    %27 = sbr.rel (0) target = $region21
  $region20: #{resnet_block_pallas.1} parent=0 // pred_region
    _
  $region21: #{resnet_block_pallas.1} parent=0 // pred_fallthru
    _
  // Predicated region
  $region22: #{resnet_block_pallas.1} parent=0 // pred_check
    _
  $region23: #{resnet_block_pallas.1} parent=0 // pred_check_branch
    %29 = sbr.rel (0) target = $region25
  $region24: #{resnet_block_pallas.1} parent=0 // pred_region
    _
  $region25: #{resnet_block_pallas.1} parent=0 // pred_fallthru
    _
  // Predicated region
  $region26: #{resnet_block_pallas.1} parent=0 // pred_check
    _
  $region27: #{resnet_block_pallas.1} parent=0 // pred_check_branch
    %31 = sbr.rel (0) target = $region29
  $region28: #{resnet_block_pallas.1} parent=0 // pred_region
    _
  $region29: #{resnet_block_pallas.1} parent=0 // pred_fallthru
    _
  // Predicated region
  $region30: #{resnet_block_pallas.1} parent=0 // pred_check
    _
  $region31: #{resnet_block_pallas.1} parent=0 // pred_check_branch
    %33 = sbr.rel (0) target = $region33
  $region32: #{resnet_block_pallas.1} parent=0 // pred_region
    _
  $region33: #{resnet_block_pallas.1} parent=0 // pred_fallthru
    _
  // Predicated region
  $region34: #{resnet_block_pallas.1} parent=0 // pred_check
    _
  $region35: #{resnet_block_pallas.1} parent=0 // pred_check_branch
    %35 = sbr.rel (0) target = $region37
  $region36: #{resnet_block_pallas.1} parent=0 // pred_region
    _
  $region37: #{resnet_block_pallas.1} parent=0 // pred_fallthru
    _
  // Predicated region
  $region38: #{resnet_block_pallas.1} parent=0 // pred_check
    _
  $region39: #{resnet_block_pallas.1} parent=0 // pred_check_branch
    %37 = sbr.rel (0) target = $region41
  $region40: #{resnet_block_pallas.1} parent=0 // pred_region
    _
  $region41: #{resnet_block_pallas.1} parent=0 // pred_fallthru
    _
  // Predicated region
  $region42: #{resnet_block_pallas.1} parent=0 // pred_check
    _
  $region43: #{resnet_block_pallas.1} parent=0 // pred_check_branch
    %39 = sbr.rel (0) target = $region45
  $region44: #{resnet_block_pallas.1} parent=0 // pred_region
    _
  $region45: #{resnet_block_pallas.1} parent=0 // pred_fallthru
    _
  // Predicated region
  $region46: #{resnet_block_pallas.1} parent=0 // pred_check
    _
  $region47: #{resnet_block_pallas.1} parent=0 // pred_check_branch
    %41 = sbr.rel (0) target = $region49
  $region48: #{resnet_block_pallas.1} parent=0 // pred_region
    _
  $region49: #{resnet_block_pallas.1} parent=0 // pred_fallthru
    _
  // Predicated region
  $region50: #{resnet_block_pallas.1} parent=0 // pred_check
    _
  $region51: #{resnet_block_pallas.1} parent=0 // pred_check_branch
    %43 = sbr.rel (0) target = $region53
  $region52: #{resnet_block_pallas.1} parent=0 // pred_region
    _
  $region53: #{resnet_block_pallas.1} parent=0 // pred_fallthru
    _
  %v44 = vld [vmem:[%s0] sm:$0xff]
  %v45 = vld [vmem:[%s0 + $0x8] sm:$0xff]
  %v46 = vld [vmem:[%s0 + $0x10] sm:$0xff]
  %v47 = vld [vmem:[%s0 + $0x18] sm:$0xff]
  %v48 = vld [vmem:[%s12] sm:$0xff]
  %v49 = vld [vmem:[%s12 + $0x8] sm:$0xff]
  %v50 = vld [vmem:[%s12 + $0x10] sm:$0xff]
  %v51 = vld [vmem:[%s12 + $0x18] sm:$0xff]
  %v52 = vld [vmem:[%s12 + $0x20] sm:$0xff]
  %v53 = vld [vmem:[%s12 + $0x28] sm:$0xff]
  %v54 = vld [vmem:[%s12 + $0x30] sm:$0xff]
  %v55 = vld [vmem:[%s12 + $0x38] sm:$0xff]
  %v56 = vld [vmem:[%s12 + $0x40] sm:$0xff]
  %v57 = vld [vmem:[%s12 + $0x48] sm:$0xff]
  %v58 = vld [vmem:[%s12 + $0x50] sm:$0xff]
  %v59 = vld [vmem:[%s12 + $0x58] sm:$0xff]
  %v60 = vld [vmem:[%s12 + $0x60] sm:$0xff]
  %v61 = vld [vmem:[%s12 + $0x68] sm:$0xff]
  %v62 = vld [vmem:[%s12 + $0x70] sm:$0xff]
  %v63 = vld [vmem:[%s12 + $0x78] sm:$0xff]
  %v64 = vlaneseq
  %v65 = vshrl.u32 %v64, 7
  %v66 = vadd.s32 %v65, 8
  %v67 = vadd.s32 %v65, 16
  %v68 = vadd.s32 %v65, 24
  %v69 = vand.u32 %v65, 15
  %v70 = vand.u32 %v66, 15
  %v71 = vand.u32 %v67, 15
  %v72 = vand.u32 %v68, 15
  %vm73 = vcmp.ne.s32.totalorder %v69, 0
  %vm74 = vcmp.ne.s32.totalorder %v70, 0
  %vm75 = vcmp.ne.s32.totalorder %v71, 0
  %vm76 = vcmp.ne.s32.totalorder %v72, 0
  %vm77 = vcmp.ne.s32.totalorder %v69, 15
  %vm78 = vcmp.ne.s32.totalorder %v70, 15
  %vm79 = vcmp.ne.s32.totalorder %v71, 15
  %vm80 = vcmp.ne.s32.totalorder %v72, 15
  %v81 = vrot.slane %v44, 7
  %v82 = vrot.slane %v45, 7
  %v83 = vrot.slane %v46, 7
  %v84 = vrot.slane %v47, 7
  %vm85 = vcmp.lt.s32.totalorder %v65, 1
  %v86 = vsel %vm85, %v83, %v84
  %v87 = vsel %vm85, %v82, %v83
  %v88 = vsel %vm85, %v81, %v82
  %v89 = vsel %vm85, %v84, %v81
  %v90 = vsel %vm73, %v89, 0.0
  %v91 = vsel %vm74, %v88, 0.0
  %v92 = vsel %vm75, %v87, 0.0
  %v93 = vsel %vm76, %v86, 0.0
  %v94 = vrot.slane %v44, 1
  %v95 = vrot.slane %v45, 1
  %v96 = vrot.slane %v46, 1
  %v97 = vrot.slane %v47, 1
  %vm98 = vcmp.lt.s32.totalorder %v65, 7
  %v99 = vsel %vm98, %v96, %v97
  %v100 = vsel %vm98, %v95, %v96
  %v101 = vsel %vm98, %v94, %v95
  %v102 = vsel %vm98, %v97, %v94
  %v103 = vsel %vm77, %v101, 0.0
  %v104 = vsel %vm78, %v100, 0.0
  %v105 = vsel %vm79, %v99, 0.0
  %v106 = vsel %vm80, %v102, 0.0
  %s107 = scalar_lea.vmem %s1, 128
  %v108 = vld [vmem:[%s107] sm:$0xff]
  %v109 = vld [vmem:[%s107 + $0x8] sm:$0xff]
  %v110 = vld [vmem:[%s107 + $0x10] sm:$0xff]
  %v111 = vld [vmem:[%s107 + $0x18] sm:$0xff]
  %v112 = vld [vmem:[%s107 + $0x20] sm:$0xff]
  %v113 = vld [vmem:[%s107 + $0x28] sm:$0xff]
  %v114 = vld [vmem:[%s107 + $0x30] sm:$0xff]
  %v115 = vld [vmem:[%s107 + $0x38] sm:$0xff]
  %v116 = vld [vmem:[%s107 + $0x40] sm:$0xff]
  %v117 = vld [vmem:[%s107 + $0x48] sm:$0xff]
  %v118 = vld [vmem:[%s107 + $0x50] sm:$0xff]
  %v119 = vld [vmem:[%s107 + $0x58] sm:$0xff]
  %v120 = vld [vmem:[%s107 + $0x60] sm:$0xff]
  %v121 = vld [vmem:[%s107 + $0x68] sm:$0xff]
  %v122 = vld [vmem:[%s107 + $0x70] sm:$0xff]
  %v123 = vld [vmem:[%s107 + $0x78] sm:$0xff]
  %v124 = vld [vmem:[%s1] sm:$0xff]
  %v125 = vld [vmem:[%s1 + $0x8] sm:$0xff]
  %v126 = vld [vmem:[%s1 + $0x10] sm:$0xff]
  %v127 = vld [vmem:[%s1 + $0x18] sm:$0xff]
  %v128 = vld [vmem:[%s1 + $0x20] sm:$0xff]
  %v129 = vld [vmem:[%s1 + $0x28] sm:$0xff]
  %v130 = vld [vmem:[%s1 + $0x30] sm:$0xff]
  %v131 = vld [vmem:[%s1 + $0x38] sm:$0xff]
  %v132 = vld [vmem:[%s1 + $0x40] sm:$0xff]
  %v133 = vld [vmem:[%s1 + $0x48] sm:$0xff]
  %v134 = vld [vmem:[%s1 + $0x50] sm:$0xff]
  %v135 = vld [vmem:[%s1 + $0x58] sm:$0xff]
  %v136 = vld [vmem:[%s1 + $0x60] sm:$0xff]
  %v137 = vld [vmem:[%s1 + $0x68] sm:$0xff]
  %v138 = vld [vmem:[%s1 + $0x70] sm:$0xff]
  %v139 = vld [vmem:[%s1 + $0x78] sm:$0xff]
  %140 = vmatpush.msra.mxu0 %v139
  %141 = vmatpush.msra.mxu0 %v138
  %142 = vmatpush.msra.mxu0 %v137
  %143 = vmatpush.msra.mxu0 %v136
  %144 = vmatpush.msra.mxu0 %v135
  %145 = vmatpush.msra.mxu0 %v134
  %146 = vmatpush.msra.mxu0 %v133
  %147 = vmatpush.msra.mxu0 %v132
  %148 = vmatpush.msra.mxu0 %v131
  %149 = vmatpush.msra.mxu0 %v130
  %150 = vmatpush.msra.mxu0 %v129
  %151 = vmatpush.msra.mxu0 %v128
  %152 = vmatpush.msra.mxu0 %v127
  %153 = vmatpush.msra.mxu0 %v126
  %154 = vmatpush.msra.mxu0 %v125
  %155 = vmatpush.msra.mxu0 %v124
  %156 = vmatmul.f32.gmra.mxu0 %v90
  %v157 = vpop.f32.mrf.mxu0
  %v158 = vadd.f32 0.0, %v157
  %159 = vmatmul.f32.gmra.mxu0 %v91
  %v160 = vpop.f32.mrf.mxu0
  %v161 = vadd.f32 0.0, %v160
  %162 = vmatmul.f32.gmra.mxu0 %v92
  %v163 = vpop.f32.mrf.mxu0
  %v164 = vadd.f32 0.0, %v163
  %165 = vmatmul.f32.gmra.mxu0 %v93
  %v166 = vpop.f32.mrf.mxu0
  %v167 = vadd.f32 0.0, %v166
  %168 = vdwg.mxu0
  %169 = vmatpush.msra.mxu0 %v123
  %170 = vmatpush.msra.mxu0 %v122
  %171 = vmatpush.msra.mxu0 %v121
  %172 = vmatpush.msra.mxu0 %v120
  %173 = vmatpush.msra.mxu0 %v119
  %174 = vmatpush.msra.mxu0 %v118
  %175 = vmatpush.msra.mxu0 %v117
  %176 = vmatpush.msra.mxu0 %v116
  %177 = vmatpush.msra.mxu0 %v115
  %178 = vmatpush.msra.mxu0 %v114
  %179 = vmatpush.msra.mxu0 %v113
  %180 = vmatpush.msra.mxu0 %v112
  %181 = vmatpush.msra.mxu0 %v111
  %182 = vmatpush.msra.mxu0 %v110
  %183 = vmatpush.msra.mxu0 %v109
  %184 = vmatpush.msra.mxu0 %v108
  %185 = vmatmul.f32.gmra.mxu0 %v44
  %v186 = vpop.f32.mrf.mxu0
  %v187 = vadd.f32 %v158, %v186
  %188 = vmatmul.f32.gmra.mxu0 %v45
  %v189 = vpop.f32.mrf.mxu0
  %v190 = vadd.f32 %v161, %v189
  %191 = vmatmul.f32.gmra.mxu0 %v46
  %v192 = vpop.f32.mrf.mxu0
  %v193 = vadd.f32 %v164, %v192
  %194 = vmatmul.f32.gmra.mxu0 %v47
  %v195 = vpop.f32.mrf.mxu0
  %v196 = vadd.f32 %v167, %v195
  %197 = vdwg.mxu0
  %s198 = scalar_lea.vmem %s1, 256
  %v199 = vld [vmem:[%s198] sm:$0xff]
  %v200 = vld [vmem:[%s198 + $0x8] sm:$0xff]
  %v201 = vld [vmem:[%s198 + $0x10] sm:$0xff]
  %v202 = vld [vmem:[%s198 + $0x18] sm:$0xff]
  %v203 = vld [vmem:[%s198 + $0x20] sm:$0xff]
  %v204 = vld [vmem:[%s198 + $0x28] sm:$0xff]
  %v205 = vld [vmem:[%s198 + $0x30] sm:$0xff]
  %v206 = vld [vmem:[%s198 + $0x38] sm:$0xff]
  %v207 = vld [vmem:[%s198 + $0x40] sm:$0xff]
  %v208 = vld [vmem:[%s198 + $0x48] sm:$0xff]
  %v209 = vld [vmem:[%s198 + $0x50] sm:$0xff]
  %v210 = vld [vmem:[%s198 + $0x58] sm:$0xff]
  %v211 = vld [vmem:[%s198 + $0x60] sm:$0xff]
  %v212 = vld [vmem:[%s198 + $0x68] sm:$0xff]
  %v213 = vld [vmem:[%s198 + $0x70] sm:$0xff]
  %v214 = vld [vmem:[%s198 + $0x78] sm:$0xff]
  %215 = vmatpush.msra.mxu0 %v214
  %216 = vmatpush.msra.mxu0 %v213
  %217 = vmatpush.msra.mxu0 %v212
  %218 = vmatpush.msra.mxu0 %v211
  %219 = vmatpush.msra.mxu0 %v210
  %220 = vmatpush.msra.mxu0 %v209
  %221 = vmatpush.msra.mxu0 %v208
  %222 = vmatpush.msra.mxu0 %v207
  %223 = vmatpush.msra.mxu0 %v206
  %224 = vmatpush.msra.mxu0 %v205
  %225 = vmatpush.msra.mxu0 %v204
  %226 = vmatpush.msra.mxu0 %v203
  %227 = vmatpush.msra.mxu0 %v202
  %228 = vmatpush.msra.mxu0 %v201
  %229 = vmatpush.msra.mxu0 %v200
  %230 = vmatpush.msra.mxu0 %v199
  %231 = vmatmul.f32.gmra.mxu0 %v103
  %v232 = vpop.f32.mrf.mxu0
  %v233 = vadd.f32 0.0, %v232
  %234 = vmatmul.f32.gmra.mxu0 %v104
  %v235 = vpop.f32.mrf.mxu0
  %v236 = vadd.f32 0.0, %v235
  %237 = vmatmul.f32.gmra.mxu0 %v105
  %v238 = vpop.f32.mrf.mxu0
  %v239 = vadd.f32 0.0, %v238
  %240 = vmatmul.f32.gmra.mxu0 %v106
  %v241 = vpop.f32.mrf.mxu0
  %v242 = vadd.f32 0.0, %v241
  %243 = vdwg.mxu0
  %v244 = vadd.f32 %v187, %v233
  %v245 = vadd.f32 %v190, %v236
  %v246 = vadd.f32 %v193, %v239
  %v247 = vadd.f32 %v196, %v242
  %v248 = vld [vmem:[%s2] sm:$0x1]
  %v250 = vperm.slane %v248, 0
  %v252 = vadd.f32 %v244, %v250
  %v253 = vadd.f32 %v245, %v250
  %v254 = vadd.f32 %v246, %v250
  %v255 = vadd.f32 %v247, %v250
  %v256 = vld [vmem:[%s3] sm:$0x1]
  %v257 = vld [vmem:[%s4] sm:$0x1]
  %v258 = vadd.f32 %v252, %v253
  %v259 = vadd.f32 %v258, %v254
  %v260 = vadd.f32 %v259, %v255
  %v261 = vrot.slane %v260, 4
  %v262 = vadd.f32 %v260, %v261
  %v263 = vrot.slane %v262, 2
  %v264 = vadd.f32 %v262, %v263
  %v265 = vrot.slane %v264, 1
  %v266 = vadd.f32 %v264, %v265
  %v267 = vmul.f32 %v252, %v252
  %v268 = vmul.f32 %v253, %v253
  %v269 = vmul.f32 %v254, %v254
  %v270 = vmul.f32 %v255, %v255
  %v271 = vadd.f32 %v267, %v268
  %v272 = vadd.f32 %v271, %v269
  %v273 = vadd.f32 %v272, %v270
  %v274 = vrot.slane %v273, 4
  %v275 = vadd.f32 %v273, %v274
  %v276 = vrot.slane %v275, 2
  %v277 = vadd.f32 %v275, %v276
  %v278 = vrot.slane %v277, 1
  %v279 = vadd.f32 %v277, %v278
  %280 = vmatpush.msra.mxu0 %v63
  %281 = vmatpush.msra.mxu0 %v62
  %282 = vmatpush.msra.mxu0 %v61
  %283 = vmatpush.msra.mxu0 %v60
  %284 = vmatpush.msra.mxu0 %v59
  %285 = vmatpush.msra.mxu0 %v58
  %286 = vmatpush.msra.mxu0 %v57
  %287 = vmatpush.msra.mxu0 %v56
  %288 = vmatpush.msra.mxu0 %v55
  %289 = vmatpush.msra.mxu0 %v54
  %290 = vmatpush.msra.mxu0 %v53
  %291 = vmatpush.msra.mxu0 %v52
  %292 = vmatpush.msra.mxu0 %v51
  %293 = vmatpush.msra.mxu0 %v50
  %294 = vmatpush.msra.mxu0 %v49
  %295 = vmatpush.msra.mxu0 %v48
  %296 = vmatmul.f32.gmra.mxu0 %v266
  %v297 = vpop.f32.mrf.mxu0
  %v298 = vadd.f32 0.0, %v297
  %299 = vdwg.mxu0
  %v300 = vmul.f32 %v298, 0.001953125
  %301 = vmatpush.msra.mxu0 %v63
  %302 = vmatpush.msra.mxu0 %v62
  %303 = vmatpush.msra.mxu0 %v61
  %304 = vmatpush.msra.mxu0 %v60
  %305 = vmatpush.msra.mxu0 %v59
  %306 = vmatpush.msra.mxu0 %v58
  %307 = vmatpush.msra.mxu0 %v57
  %308 = vmatpush.msra.mxu0 %v56
  %309 = vmatpush.msra.mxu0 %v55
  %310 = vmatpush.msra.mxu0 %v54
  %311 = vmatpush.msra.mxu0 %v53
  %312 = vmatpush.msra.mxu0 %v52
  %313 = vmatpush.msra.mxu0 %v51
  %314 = vmatpush.msra.mxu0 %v50
  %315 = vmatpush.msra.mxu0 %v49
  %316 = vmatpush.msra.mxu0 %v48
  %317 = vmatmul.f32.gmra.mxu0 %v279
  %v318 = vpop.f32.mrf.mxu0
  %v319 = vadd.f32 0.0, %v318
  %320 = vdwg.mxu0
  %v321 = vmul.f32 %v319, 0.001953125
  %v322 = vmul.f32 %v300, %v300
  %v323 = vsub.f32 %v321, %v322
  %v324 = vadd.f32 %v323, 1e-05
  %v325 = vrsqrt.pop %v324
  %v326 = vmul.f32 %v325, %v324
  %v327 = vmul.f32 %v326, %v325
  %v328 = vmul.f32 0.5, %v327
  %v329 = vsub.f32 1.5, %v328
  %v330 = vmul.f32 %v325, %v329
  %vm331 = vweird.f32 %v324
  %vm332 = vweird.f32 %v325
  %vm333 = vmor %vm331, %vm332
  %v334 = vsel %vm333, %v325, %v330
  %v335 = vmul.f32 %v256, %v334
  %v336 = vmul.f32 %v300, %v335
  %v337 = vsub.f32 %v257, %v336
  %v339 = vperm.slane %v335, 0
  %v341 = vmul.f32 %v252, %v339
  %v342 = vmul.f32 %v253, %v339
  %v343 = vmul.f32 %v254, %v339
  %v344 = vmul.f32 %v255, %v339
  %v346 = vperm.slane %v337, 0
  %v348 = vadd.f32 %v341, %v346
  %v349 = vadd.f32 %v342, %v346
  %v350 = vadd.f32 %v343, %v346
  %v351 = vadd.f32 %v344, %v346
  %v352 = vmul.f32 %v348, 0.5
  %v353 = vmul.f32 %v349, 0.5
  %v354 = vmul.f32 %v350, 0.5
  %v355 = vmul.f32 %v351, 0.5
  %v356 = vtanh.pop %v352
  %v357 = vtanh.pop %v353
  %v358 = vtanh.pop %v354
  %v359 = vtanh.pop %v355
  %v360 = vadd.f32 %v356, 1.0
  %v361 = vadd.f32 %v357, 1.0
  %v362 = vadd.f32 %v358, 1.0
  %v363 = vadd.f32 %v359, 1.0
  %v364 = vmul.f32 %v360, 0.5
  %v365 = vmul.f32 %v361, 0.5
  %v366 = vmul.f32 %v362, 0.5
  %v367 = vmul.f32 %v363, 0.5
  %v368 = vmul.f32 %v348, %v364
  %v369 = vmul.f32 %v349, %v365
  %v370 = vmul.f32 %v350, %v366
  %v371 = vmul.f32 %v351, %v367
  %v372 = vld [vmem:[%s9] sm:$0xff]
  %v373 = vld [vmem:[%s9 + $0x8] sm:$0xff]
  %v374 = vld [vmem:[%s9 + $0x10] sm:$0xff]
  %v375 = vld [vmem:[%s9 + $0x18] sm:$0xff]
  %v376 = vld [vmem:[%s10] sm:$0xff]
  %v377 = vld [vmem:[%s11] sm:$0x1]
  %v379 = vperm.slane %v377, 0
  %vm381 = vcmask 64512
  %v383 = vsel %vm381, %v372, 0
  %v386 = vsel %vm381, %v373, 0
  %v389 = vsel %vm381, %v374, 0
  %v392 = vsel %vm381, %v375, 0
  %394 = vmatpush.msra.mxu0 0.0
  %395 = vmatpush.msra.mxu0 0.0
  %396 = vmatpush.msra.mxu0 0.0
  %397 = vmatpush.msra.mxu0 0.0
  %398 = vmatpush.msra.mxu0 0.0
  %399 = vmatpush.msra.mxu0 0.0
  %400 = vmatpush.msra.mxu0 0.0
  %401 = vmatpush.msra.mxu0 0.0
  %402 = vmatpush.msra.mxu0 0.0
  %403 = vmatpush.msra.mxu0 0.0
  %404 = vmatpush.msra.mxu0 0.0
  %405 = vmatpush.msra.mxu0 0.0
  %406 = vmatpush.msra.mxu0 0.0
  %407 = vmatpush.msra.mxu0 0.0
  %408 = vmatpush.msra.mxu0 0.0
  %409 = vmatpush.msra.mxu0 %v376
  %410 = vmatmul.f32.gmra.mxu0 %v383
  %v411 = vpop.f32.mrf.mxu0
  %v412 = vadd.f32 %v379, %v411
  %413 = vmatmul.f32.gmra.mxu0 %v386
  %v414 = vpop.f32.mrf.mxu0
  %v415 = vadd.f32 %v379, %v414
  %416 = vmatmul.f32.gmra.mxu0 %v389
  %v417 = vpop.f32.mrf.mxu0
  %v418 = vadd.f32 %v379, %v417
  %419 = vmatmul.f32.gmra.mxu0 %v392
  %v420 = vpop.f32.mrf.mxu0
  %v421 = vadd.f32 %v379, %v420
  %422 = vdwg.mxu0
  %v423 = vadd.f32 %v368, %v412
  %v424 = vadd.f32 %v369, %v415
  %v425 = vadd.f32 %v370, %v418
  %v426 = vadd.f32 %v371, %v421
  %v427 = vrot.slane %v423, 7
  %v428 = vrot.slane %v424, 7
  %v429 = vrot.slane %v425, 7
  %v430 = vrot.slane %v426, 7
  %v431 = vsel %vm85, %v429, %v430
  %v432 = vsel %vm85, %v428, %v429
  %v433 = vsel %vm85, %v427, %v428
  %v434 = vsel %vm85, %v430, %v427
  %v435 = vsel %vm73, %v434, 0.0
  %v436 = vsel %vm74, %v433, 0.0
  %v437 = vsel %vm75, %v432, 0.0
  %v438 = vsel %vm76, %v431, 0.0
  %v439 = vrot.slane %v423, 1
  %v440 = vrot.slane %v424, 1
  %v441 = vrot.slane %v425, 1
  %v442 = vrot.slane %v426, 1
  %v443 = vsel %vm98, %v441, %v442
  %v444 = vsel %vm98, %v440, %v441
  %v445 = vsel %vm98, %v439, %v440
  %v446 = vsel %vm98, %v442, %v439
  %v447 = vsel %vm77, %v445, 0.0
  %v448 = vsel %vm78, %v444, 0.0
  %v449 = vsel %vm79, %v443, 0.0
  %v450 = vsel %vm80, %v446, 0.0
  %s451 = scalar_lea.vmem %s5, 128
  %v452 = vld [vmem:[%s451] sm:$0xff]
  %v453 = vld [vmem:[%s451 + $0x8] sm:$0xff]
  %v454 = vld [vmem:[%s451 + $0x10] sm:$0xff]
  %v455 = vld [vmem:[%s451 + $0x18] sm:$0xff]
  %v456 = vld [vmem:[%s451 + $0x20] sm:$0xff]
  %v457 = vld [vmem:[%s451 + $0x28] sm:$0xff]
  %v458 = vld [vmem:[%s451 + $0x30] sm:$0xff]
  %v459 = vld [vmem:[%s451 + $0x38] sm:$0xff]
  %v460 = vld [vmem:[%s451 + $0x40] sm:$0xff]
  %v461 = vld [vmem:[%s451 + $0x48] sm:$0xff]
  %v462 = vld [vmem:[%s451 + $0x50] sm:$0xff]
  %v463 = vld [vmem:[%s451 + $0x58] sm:$0xff]
  %v464 = vld [vmem:[%s451 + $0x60] sm:$0xff]
  %v465 = vld [vmem:[%s451 + $0x68] sm:$0xff]
  %v466 = vld [vmem:[%s451 + $0x70] sm:$0xff]
  %v467 = vld [vmem:[%s451 + $0x78] sm:$0xff]
  %v468 = vld [vmem:[%s5] sm:$0xff]
  %v469 = vld [vmem:[%s5 + $0x8] sm:$0xff]
  %v470 = vld [vmem:[%s5 + $0x10] sm:$0xff]
  %v471 = vld [vmem:[%s5 + $0x18] sm:$0xff]
  %v472 = vld [vmem:[%s5 + $0x20] sm:$0xff]
  %v473 = vld [vmem:[%s5 + $0x28] sm:$0xff]
  %v474 = vld [vmem:[%s5 + $0x30] sm:$0xff]
  %v475 = vld [vmem:[%s5 + $0x38] sm:$0xff]
  %v476 = vld [vmem:[%s5 + $0x40] sm:$0xff]
  %v477 = vld [vmem:[%s5 + $0x48] sm:$0xff]
  %v478 = vld [vmem:[%s5 + $0x50] sm:$0xff]
  %v479 = vld [vmem:[%s5 + $0x58] sm:$0xff]
  %v480 = vld [vmem:[%s5 + $0x60] sm:$0xff]
  %v481 = vld [vmem:[%s5 + $0x68] sm:$0xff]
  %v482 = vld [vmem:[%s5 + $0x70] sm:$0xff]
  %v483 = vld [vmem:[%s5 + $0x78] sm:$0xff]
  %484 = vmatpush.msra.mxu0 %v483
  %485 = vmatpush.msra.mxu0 %v482
  %486 = vmatpush.msra.mxu0 %v481
  %487 = vmatpush.msra.mxu0 %v480
  %488 = vmatpush.msra.mxu0 %v479
  %489 = vmatpush.msra.mxu0 %v478
  %490 = vmatpush.msra.mxu0 %v477
  %491 = vmatpush.msra.mxu0 %v476
  %492 = vmatpush.msra.mxu0 %v475
  %493 = vmatpush.msra.mxu0 %v474
  %494 = vmatpush.msra.mxu0 %v473
  %495 = vmatpush.msra.mxu0 %v472
  %496 = vmatpush.msra.mxu0 %v471
  %497 = vmatpush.msra.mxu0 %v470
  %498 = vmatpush.msra.mxu0 %v469
  %499 = vmatpush.msra.mxu0 %v468
  %500 = vmatmul.f32.gmra.mxu0 %v435
  %v501 = vpop.f32.mrf.mxu0
  %v502 = vadd.f32 0.0, %v501
  %503 = vmatmul.f32.gmra.mxu0 %v436
  %v504 = vpop.f32.mrf.mxu0
  %v505 = vadd.f32 0.0, %v504
  %506 = vmatmul.f32.gmra.mxu0 %v437
  %v507 = vpop.f32.mrf.mxu0
  %v508 = vadd.f32 0.0, %v507
  %509 = vmatmul.f32.gmra.mxu0 %v438
  %v510 = vpop.f32.mrf.mxu0
  %v511 = vadd.f32 0.0, %v510
  %512 = vdwg.mxu0
  %513 = vmatpush.msra.mxu0 %v467
  %514 = vmatpush.msra.mxu0 %v466
  %515 = vmatpush.msra.mxu0 %v465
  %516 = vmatpush.msra.mxu0 %v464
  %517 = vmatpush.msra.mxu0 %v463
  %518 = vmatpush.msra.mxu0 %v462
  %519 = vmatpush.msra.mxu0 %v461
  %520 = vmatpush.msra.mxu0 %v460
  %521 = vmatpush.msra.mxu0 %v459
  %522 = vmatpush.msra.mxu0 %v458
  %523 = vmatpush.msra.mxu0 %v457
  %524 = vmatpush.msra.mxu0 %v456
  %525 = vmatpush.msra.mxu0 %v455
  %526 = vmatpush.msra.mxu0 %v454
  %527 = vmatpush.msra.mxu0 %v453
  %528 = vmatpush.msra.mxu0 %v452
  %529 = vmatmul.f32.gmra.mxu0 %v423
  %v530 = vpop.f32.mrf.mxu0
  %v531 = vadd.f32 %v502, %v530
  %532 = vmatmul.f32.gmra.mxu0 %v424
  %v533 = vpop.f32.mrf.mxu0
  %v534 = vadd.f32 %v505, %v533
  %535 = vmatmul.f32.gmra.mxu0 %v425
  %v536 = vpop.f32.mrf.mxu0
  %v537 = vadd.f32 %v508, %v536
  %538 = vmatmul.f32.gmra.mxu0 %v426
  %v539 = vpop.f32.mrf.mxu0
  %v540 = vadd.f32 %v511, %v539
  %541 = vdwg.mxu0
  %s542 = scalar_lea.vmem %s5, 256
  %v543 = vld [vmem:[%s542] sm:$0xff]
  %v544 = vld [vmem:[%s542 + $0x8] sm:$0xff]
  %v545 = vld [vmem:[%s542 + $0x10] sm:$0xff]
  %v546 = vld [vmem:[%s542 + $0x18] sm:$0xff]
  %v547 = vld [vmem:[%s542 + $0x20] sm:$0xff]
  %v548 = vld [vmem:[%s542 + $0x28] sm:$0xff]
  %v549 = vld [vmem:[%s542 + $0x30] sm:$0xff]
  %v550 = vld [vmem:[%s542 + $0x38] sm:$0xff]
  %v551 = vld [vmem:[%s542 + $0x40] sm:$0xff]
  %v552 = vld [vmem:[%s542 + $0x48] sm:$0xff]
  %v553 = vld [vmem:[%s542 + $0x50] sm:$0xff]
  %v554 = vld [vmem:[%s542 + $0x58] sm:$0xff]
  %v555 = vld [vmem:[%s542 + $0x60] sm:$0xff]
  %v556 = vld [vmem:[%s542 + $0x68] sm:$0xff]
  %v557 = vld [vmem:[%s542 + $0x70] sm:$0xff]
  %v558 = vld [vmem:[%s542 + $0x78] sm:$0xff]
  %559 = vmatpush.msra.mxu0 %v558
  %560 = vmatpush.msra.mxu0 %v557
  %561 = vmatpush.msra.mxu0 %v556
  %562 = vmatpush.msra.mxu0 %v555
  %563 = vmatpush.msra.mxu0 %v554
  %564 = vmatpush.msra.mxu0 %v553
  %565 = vmatpush.msra.mxu0 %v552
  %566 = vmatpush.msra.mxu0 %v551
  %567 = vmatpush.msra.mxu0 %v550
  %568 = vmatpush.msra.mxu0 %v549
  %569 = vmatpush.msra.mxu0 %v548
  %570 = vmatpush.msra.mxu0 %v547
  %571 = vmatpush.msra.mxu0 %v546
  %572 = vmatpush.msra.mxu0 %v545
  %573 = vmatpush.msra.mxu0 %v544
  %574 = vmatpush.msra.mxu0 %v543
  %575 = vmatmul.f32.gmra.mxu0 %v447
  %v576 = vpop.f32.mrf.mxu0
  %v577 = vadd.f32 0.0, %v576
  %578 = vmatmul.f32.gmra.mxu0 %v448
  %v579 = vpop.f32.mrf.mxu0
  %v580 = vadd.f32 0.0, %v579
  %581 = vmatmul.f32.gmra.mxu0 %v449
  %v582 = vpop.f32.mrf.mxu0
  %v583 = vadd.f32 0.0, %v582
  %584 = vmatmul.f32.gmra.mxu0 %v450
  %v585 = vpop.f32.mrf.mxu0
  %v586 = vadd.f32 0.0, %v585
  %587 = vdwg.mxu0
  %v588 = vadd.f32 %v531, %v577
  %v589 = vadd.f32 %v534, %v580
  %v590 = vadd.f32 %v537, %v583
  %v591 = vadd.f32 %v540, %v586
  %v592 = vld [vmem:[%s6] sm:$0x1]
  %v594 = vperm.slane %v592, 0
  %v596 = vadd.f32 %v588, %v594
  %v597 = vadd.f32 %v589, %v594
  %v598 = vadd.f32 %v590, %v594
  %v599 = vadd.f32 %v591, %v594
  %v600 = vld [vmem:[%s7] sm:$0x1]
  %v601 = vld [vmem:[%s8] sm:$0x1]
  %v602 = vadd.f32 %v596, %v597
  %v603 = vadd.f32 %v602, %v598
  %v604 = vadd.f32 %v603, %v599
  %v605 = vrot.slane %v604, 4
  %v606 = vadd.f32 %v604, %v605
  %v607 = vrot.slane %v606, 2
  %v608 = vadd.f32 %v606, %v607
  %v609 = vrot.slane %v608, 1
  %v610 = vadd.f32 %v608, %v609
  %v611 = vmul.f32 %v596, %v596
  %v612 = vmul.f32 %v597, %v597
  %v613 = vmul.f32 %v598, %v598
  %v614 = vmul.f32 %v599, %v599
  %v615 = vadd.f32 %v611, %v612
  %v616 = vadd.f32 %v615, %v613
  %v617 = vadd.f32 %v616, %v614
  %v618 = vrot.slane %v617, 4
  %v619 = vadd.f32 %v617, %v618
  %v620 = vrot.slane %v619, 2
  %v621 = vadd.f32 %v619, %v620
  %v622 = vrot.slane %v621, 1
  %v623 = vadd.f32 %v621, %v622
  %624 = vmatpush.msra.mxu0 %v63
  %625 = vmatpush.msra.mxu0 %v62
  %626 = vmatpush.msra.mxu0 %v61
  %627 = vmatpush.msra.mxu0 %v60
  %628 = vmatpush.msra.mxu0 %v59
  %629 = vmatpush.msra.mxu0 %v58
  %630 = vmatpush.msra.mxu0 %v57
  %631 = vmatpush.msra.mxu0 %v56
  %632 = vmatpush.msra.mxu0 %v55
  %633 = vmatpush.msra.mxu0 %v54
  %634 = vmatpush.msra.mxu0 %v53
  %635 = vmatpush.msra.mxu0 %v52
  %636 = vmatpush.msra.mxu0 %v51
  %637 = vmatpush.msra.mxu0 %v50
  %638 = vmatpush.msra.mxu0 %v49
  %639 = vmatpush.msra.mxu0 %v48
  %640 = vmatmul.f32.gmra.mxu0 %v610
  %v641 = vpop.f32.mrf.mxu0
  %v642 = vadd.f32 0.0, %v641
  %643 = vdwg.mxu0
  %v644 = vmul.f32 %v642, 0.001953125
  %645 = vmatpush.msra.mxu0 %v63
  %646 = vmatpush.msra.mxu0 %v62
  %647 = vmatpush.msra.mxu0 %v61
  %648 = vmatpush.msra.mxu0 %v60
  %649 = vmatpush.msra.mxu0 %v59
  %650 = vmatpush.msra.mxu0 %v58
  %651 = vmatpush.msra.mxu0 %v57
  %652 = vmatpush.msra.mxu0 %v56
  %653 = vmatpush.msra.mxu0 %v55
  %654 = vmatpush.msra.mxu0 %v54
  %655 = vmatpush.msra.mxu0 %v53
  %656 = vmatpush.msra.mxu0 %v52
  %657 = vmatpush.msra.mxu0 %v51
  %658 = vmatpush.msra.mxu0 %v50
  %659 = vmatpush.msra.mxu0 %v49
  %660 = vmatpush.msra.mxu0 %v48
  %661 = vmatmul.f32.gmra.mxu0 %v623
  %v662 = vpop.f32.mrf.mxu0
  %v663 = vadd.f32 0.0, %v662
  %664 = vdwg.mxu0
  %v665 = vmul.f32 %v663, 0.001953125
  %v666 = vmul.f32 %v644, %v644
  %v667 = vsub.f32 %v665, %v666
  %v668 = vadd.f32 %v667, 1e-05
  %v669 = vrsqrt.pop %v668
  %v670 = vmul.f32 %v669, %v668
  %v671 = vmul.f32 %v670, %v669
  %v672 = vmul.f32 0.5, %v671
  %v673 = vsub.f32 1.5, %v672
  %v674 = vmul.f32 %v669, %v673
  %vm675 = vweird.f32 %v668
  %vm676 = vweird.f32 %v669
  %vm677 = vmor %vm675, %vm676
  %v678 = vsel %vm677, %v669, %v674
  %v679 = vmul.f32 %v600, %v678
  %v680 = vmul.f32 %v644, %v679
  %v681 = vsub.f32 %v601, %v680
  %v683 = vperm.slane %v679, 0
  %v685 = vmul.f32 %v596, %v683
  %v686 = vmul.f32 %v597, %v683
  %v687 = vmul.f32 %v598, %v683
  %v688 = vmul.f32 %v599, %v683
  %v690 = vperm.slane %v681, 0
  %v692 = vadd.f32 %v685, %v690
  %v693 = vadd.f32 %v686, %v690
  %v694 = vadd.f32 %v687, %v690
  %v695 = vadd.f32 %v688, %v690
  %v696 = vadd.f32 %v692, %v44
  %v697 = vadd.f32 %v693, %v45
  %v698 = vadd.f32 %v694, %v46
  %v699 = vadd.f32 %v695, %v47
  %v700 = vmul.f32 %v696, 0.5
  %v701 = vmul.f32 %v697, 0.5
  %v702 = vmul.f32 %v698, 0.5
  %v703 = vmul.f32 %v699, 0.5
  %v704 = vtanh.pop %v700
  %v705 = vtanh.pop %v701
  %v706 = vtanh.pop %v702
  %v707 = vtanh.pop %v703
  %v708 = vadd.f32 %v704, 1.0
  %v709 = vadd.f32 %v705, 1.0
  %v710 = vadd.f32 %v706, 1.0
  %v711 = vadd.f32 %v707, 1.0
  %v712 = vmul.f32 %v708, 0.5
  %v713 = vmul.f32 %v709, 0.5
  %v714 = vmul.f32 %v710, 0.5
  %v715 = vmul.f32 %v711, 0.5
  %v716 = vmul.f32 %v696, %v712
  %v717 = vmul.f32 %v697, %v713
  %v718 = vmul.f32 %v698, %v714
  %v719 = vmul.f32 %v699, %v715
  %720 = vst [vmem:[%s13] sm:$0xff] %v716
  %721 = vst [vmem:[%s13 + $0x8] sm:$0xff] %v717
  %722 = vst [vmem:[%s13 + $0x10] sm:$0xff] %v718
  %723 = vst [vmem:[%s13 + $0x18] sm:$0xff] %v719
  // Predicated region
  $region54: #{resnet_block_pallas.1} parent=0 // pred_check
    _
  $region55: #{resnet_block_pallas.1} parent=0 // pred_check_branch
    %725 = sbr.rel (0) target = $region57
  $region56: #{resnet_block_pallas.1} parent=0 // pred_region
    _
  $region57: #{resnet_block_pallas.1} parent=0 // pred_fallthru
    _
  // Predicated region
  $region58: #{resnet_block_pallas.1} parent=0 // pred_check
    _
  $region59: #{resnet_block_pallas.1} parent=0 // pred_check_branch
    %727 = sbr.rel (0) target = $region61
  $region60: #{resnet_block_pallas.1} parent=0 // pred_region
    _
  $region61: #{resnet_block_pallas.1} parent=0 // pred_fallthru
    _

</llo_original>
